<compile_context>
chip_gen: v6e
topology: v6e:2x2x1
jax: 0.10.0
libtpu: 0.0.40
codegen_flags: <defaults>
</compile_context>

<pallas_src>
import functools

import jax
import jax.numpy as jnp
from jax.experimental import pallas as pl
from jax.experimental.pallas import tpu as pltpu


NUM_INPUTS = 2      # MountainCar-v0 observation dim (position, velocity)
H1, H2, H3 = 64, 128, 64
LANES = 128         # lane-dense width of the fused output slab


def _round_up(n, m):
    return ((n + m - 1) // m) * m


def _actor_critic_kernel(x_ref, c_ref, w2_ref, w3_ref, out_ref):
    """Fused 3-layer MLP + critic head over one batch tile.

    c_ref is an (8, 128) f32 constants block:
      rows 0-1 : w1 (2 x 64, lanes 64..127 zero)
      row  2   : b1 (lanes 64..127 zero)
      row  3   : b2 (full 128 lanes)
      row  4   : b3 (lanes 64..127 zero)
      row  5   : wc (critic weight, lanes 64..127 zero)
      row  6   : one-hot(lane 64)       -- scatter row for the critic value
      row  7   : bc at lane 64, else 0  -- scatter row for the critic bias
    w2_ref: [128, 128] bf16, rows 64..127 zero.     w3_ref: [128, 128] bf16, cols 64..127 zero.
    Output slab: lanes 0..63 = feat, lane 64 = critic value, lanes 65..127 = 0.
    """
    x = x_ref[...]                                   # [TB, 2]   f32
    c = c_ref[...]                                   # [8, 128]  f32

    # Layer 1 (K=2): depth-2 contraction on the VPU (broadcast multiply-add), f32.
    h = x[:, 0:1] * c[0:1, :] + x[:, 1:2] * c[1:2, :] + c[2:3, :]
    h = jnp.maximum(h, 0.0)                          # [TB, 128], lanes 64+ are 0

    # Layer 2: bf16 x bf16 MXU matmul, f32 accumulation (zero rows of w2p contribute 0).
    h = jnp.dot(h.astype(jnp.bfloat16), w2_ref[...],
                preferred_element_type=jnp.float32) + c[3:4, :]
    h = jnp.maximum(h, 0.0)                          # [TB, 128]

    # Layer 3: bf16 x bf16 MXU matmul, f32 accumulation; cols 64..127 stay exactly 0.
    h = jnp.dot(h.astype(jnp.bfloat16), w3_ref[...],
                preferred_element_type=jnp.float32) + c[4:5, :]
    h = jnp.maximum(h, 0.0)                          # [TB, 128], lanes 0..63 = feat

    # Critic head in f32: value = feat @ wc (VPU mul + XLU lane reduce), scattered to lane 64.
    value = jnp.sum(h * c[5:6, :], axis=-1, keepdims=True)     # [TB, 1]
    out_ref[...] = h + value * c[6:7, :] + c[7:8, :]


@functools.partial(jax.jit, static_argnames=("tb",))
def actor_critic_forward(x, packed, *, tb=2048):
    """Fused ActorCritic forward. Returns (critic_value [B,1], features [B,64])."""
    B = x.shape[0]

    # Batch tiling: a single sublane-aligned tile for small rollout batches, otherwise
    # tb-row tiles that Pallas double-buffers; ragged batches are zero-padded.
    TB = _round_up(B, 8) if B <= tb else tb
    Bp = _round_up(B, TB)
    if Bp != B:
        x = jnp.pad(x, ((0, Bp - B), (0, 0)))

    out = pl.pallas_call(
        _actor_critic_kernel,
        out_shape=jax.ShapeDtypeStruct((Bp, LANES), jnp.float32),
        grid=(Bp // TB,),
        in_specs=[
            pl.BlockSpec((TB, NUM_INPUTS), lambda i: (i, 0)),   # batch-tiled input
            pl.BlockSpec((8, LANES), lambda i: (0, 0)),         # constants (VMEM-resident)
            pl.BlockSpec((LANES, LANES), lambda i: (0, 0)),     # w2 padded, bf16
            pl.BlockSpec((LANES, LANES), lambda i: (0, 0)),     # w3 padded, bf16
        ],
        out_specs=pl.BlockSpec((TB, LANES), lambda i: (i, 0)),
        # On v7x one can use pltpu.CORE_PARALLEL here to shard the batch axis across
        # the 2 TensorCores; "parallel" is the portable v5e/v6e/v7x-safe choice.
        compiler_params=pltpu.CompilerParams(
            dimension_semantics=("parallel",)),
    )(x, packed["consts"], packed["w2"], packed["w3"])

    feat = out[:B, :H3]
    value = out[:B, H3:H3 + 1]
    return value, feat


def pack_params(params):
    """Pack PyTorch-layout params into the kernel operands (consts block + padded bf16 weights)."""
    consts = jnp.zeros((8, LANES), jnp.float32)
    consts = consts.at[0:2, :H1].set(params["w1"])             # rows 0-1: w1 [2,64]
    consts = consts.at[2, :H1].set(params["b1"][0])            # row 2: b1
    consts = consts.at[3, :H2].set(params["b2"][0])            # row 3: b2
    consts = consts.at[4, :H3].set(params["b3"][0])            # row 4: b3
    consts = consts.at[5, :H3].set(params["wc"][:, 0])         # row 5: wc
    consts = consts.at[6, H3].set(1.0)                         # row 6: one-hot(lane 64)
    consts = consts.at[7, H3].set(params["bc"][0, 0])          # row 7: bc at lane 64

    w2p = jnp.zeros((LANES, LANES), jnp.bfloat16)
    w2p = w2p.at[:H1, :].set(params["w2"].astype(jnp.bfloat16))
    w3p = jnp.zeros((LANES, LANES), jnp.bfloat16)
    w3p = w3p.at[:, :H3].set(params["w3"].astype(jnp.bfloat16))
    return {"consts": consts, "w2": w2p, "w3": w3p}


def _xavier_uniform(key, fan_in, fan_out):
    # matches nn.init.xavier_uniform_ (gain=1): U(-a, a), a = sqrt(6/(fan_in+fan_out))
    a = jnp.sqrt(6.0 / (fan_in + fan_out))
    # PyTorch weight is [out, in]; sample in that shape then transpose to [in, out].
    w = jax.random.uniform(key, (fan_out, fan_in), jnp.float32, minval=-a, maxval=a)
    return w.T


def _default_bias(key, fan_in, fan_out):
    # PyTorch nn.Linear default bias init: U(-1/sqrt(fan_in), 1/sqrt(fan_in))
    bound = 1.0 / jnp.sqrt(fan_in)
    return jax.random.uniform(key, (1, fan_out), jnp.float32, minval=-bound, maxval=bound)


def init_params(key):
    ks = jax.random.split(key, 8)
    return {
        "w1": _xavier_uniform(ks[0], NUM_INPUTS, H1),
        "b1": _default_bias(ks[1], NUM_INPUTS, H1),
        "w2": _xavier_uniform(ks[2], H1, H2),
        "b2": _default_bias(ks[3], H1, H2),
        "w3": _xavier_uniform(ks[4], H2, H3),
        "b3": _default_bias(ks[5], H2, H3),
        "wc": _xavier_uniform(ks[6], H3, 1),
        "bc": _default_bias(ks[7], H3, 1),
    }
    # NOTE: actor_head is only used in .act(), not in forward(); omitted here.
    # TODO(synk): .act()'s Categorical sampling / epsilon-greedy branch uses host RNG and
    # Python control flow -- no clean Pallas equivalent, left to the host/JAX level.


def _reference_forward(x, params):
    # Mirrors the kernel's precision choices (f32 layer 1 + critic head, bf16 MXU layers).
    h = jnp.maximum(jnp.dot(x, params["w1"]) + params["b1"], 0.0)
    h = jnp.maximum(jnp.dot(h.astype(jnp.bfloat16), params["w2"].astype(jnp.bfloat16),
                            preferred_element_type=jnp.float32) + params["b2"], 0.0)
    h = jnp.maximum(jnp.dot(h.astype(jnp.bfloat16), params["w3"].astype(jnp.bfloat16),
                            preferred_element_type=jnp.float32) + params["b3"], 0.0)
    v = jnp.dot(h, params["wc"], preferred_element_type=jnp.float32) + params["bc"]
    return v, h


if __name__ == "__main__":
    key = jax.random.PRNGKey(0)
    k_params, k_x1, k_x2 = jax.random.split(key, 3)
    params = init_params(k_params)
    packed = pack_params(params)

    # Small rollout-style batch (single-tile path).
    batch = 8
    x = jax.random.uniform(k_x1, (batch, NUM_INPUTS), jnp.float32, minval=-1.0, maxval=1.0)
    value, feat = actor_critic_forward(x, packed)
    jax.block_until_ready((value, feat))
    v_ref, f_ref = _reference_forward(x, params)
    assert value.shape == (batch, 1) and feat.shape == (batch, H3)
    assert jnp.allclose(feat, f_ref, atol=2e-3, rtol=2e-3), "feature mismatch (small batch)"
    assert jnp.allclose(value, v_ref, atol=2e-3, rtol=2e-3), "value mismatch (small batch)"

    # Ragged batch with a small tile to exercise the multi-step grid + zero-padding path.
    batch2 = 600
    x2 = jax.random.uniform(k_x2, (batch2, NUM_INPUTS), jnp.float32, minval=-1.0, maxval=1.0)
    value2, feat2 = actor_critic_forward(x2, packed, tb=256)
    jax.block_until_ready((value2, feat2))
    v_ref2, f_ref2 = _reference_forward(x2, params)
    assert value2.shape == (batch2, 1) and feat2.shape == (batch2, H3)
    assert jnp.allclose(feat2, f_ref2, atol=2e-3, rtol=2e-3), "feature mismatch (multi-tile)"
    assert jnp.allclose(value2, v_ref2, atol=2e-3, rtol=2e-3), "value mismatch (multi-tile)"

    print("KERNEL_OK")
</pallas_src>

<mosaic_0001>
module attributes {stable_mosaic.version = 11 : i64} {
  func.func @_actor_critic_kernel(%arg0: i32, %arg1: memref<8x2xf32, #tpu.memory_space<vmem>>, %arg2: memref<8x128xf32, #tpu.memory_space<vmem>>, %arg3: memref<128x128xbf16, #tpu.memory_space<vmem>>, %arg4: memref<128x128xbf16, #tpu.memory_space<vmem>>, %arg5: memref<8x128xf32, #tpu.memory_space<vmem>>) attributes {dimension_semantics = [#tpu.dimension_semantics<parallel>], iteration_bounds = array<i64: 1>, scalar_prefetch = 0 : i64, scratch_operands = 0 : i64, tpu.core_type = #tpu.core_type<tc>, window_params = [{transform_indices = @transform_0, window_bounds = array<i64: 8, 2>}, {pipeline_mode = #tpu.pipeline_mode<synchronous>, transform_indices = @transform_1, window_bounds = array<i64: 8, 128>}, {pipeline_mode = #tpu.pipeline_mode<synchronous>, transform_indices = @transform_2, window_bounds = array<i64: 128, 128>}, {pipeline_mode = #tpu.pipeline_mode<synchronous>, transform_indices = @transform_3, window_bounds = array<i64: 128, 128>}, {transform_indices = @transform_4, window_bounds = array<i64: 8, 128>}]} {
    %c0 = arith.constant 0 : index
    %c0_0 = arith.constant 0 : index
    %0 = vector.load %arg1[%c0, %c0_0] : memref<8x2xf32, #tpu.memory_space<vmem>>, vector<8x2xf32>
    %c0_1 = arith.constant 0 : index
    %c0_2 = arith.constant 0 : index
    %1 = vector.load %arg2[%c0_1, %c0_2] : memref<8x128xf32, #tpu.memory_space<vmem>>, vector<8x128xf32>
    %2 = vector.extract_strided_slice %0 {offsets = [0, 0], sizes = [8, 1], strides = [1, 1]} : vector<8x2xf32> to vector<8x1xf32>
    %3 = vector.extract_strided_slice %1 {offsets = [0, 0], sizes = [1, 128], strides = [1, 1]} : vector<8x128xf32> to vector<1x128xf32>
    %4 = vector.broadcast %2 : vector<8x1xf32> to vector<8x128xf32>
    %5 = vector.broadcast %3 : vector<1x128xf32> to vector<8x128xf32>
    %6 = arith.mulf %4, %5 : vector<8x128xf32>
    %7 = vector.extract_strided_slice %0 {offsets = [0, 1], sizes = [8, 1], strides = [1, 1]} : vector<8x2xf32> to vector<8x1xf32>
    %8 = vector.extract_strided_slice %1 {offsets = [1, 0], sizes = [1, 128], strides = [1, 1]} : vector<8x128xf32> to vector<1x128xf32>
    %9 = vector.broadcast %7 : vector<8x1xf32> to vector<8x128xf32>
    %10 = vector.broadcast %8 : vector<1x128xf32> to vector<8x128xf32>
    %11 = arith.mulf %9, %10 : vector<8x128xf32>
    %12 = arith.addf %6, %11 : vector<8x128xf32>
    %13 = vector.extract_strided_slice %1 {offsets = [2, 0], sizes = [1, 128], strides = [1, 1]} : vector<8x128xf32> to vector<1x128xf32>
    %14 = vector.broadcast %13 : vector<1x128xf32> to vector<8x128xf32>
    %15 = arith.addf %12, %14 : vector<8x128xf32>
    %cst = arith.constant 0.000000e+00 : f32
    %16 = vector.broadcast %cst : f32 to vector<8x128xf32>
    %17 = arith.maximumf %15, %16 : vector<8x128xf32>
    %18 = arith.truncf %17 : vector<8x128xf32> to vector<8x128xbf16>
    %c0_3 = arith.constant 0 : index
    %c0_4 = arith.constant 0 : index
    %19 = vector.load %arg3[%c0_3, %c0_4] : memref<128x128xbf16, #tpu.memory_space<vmem>>, vector<128x128xbf16>
    %cst_5 = arith.constant dense<0.000000e+00> : vector<8x128xf32>
    %20 = tpu.matmul %18, %19, %cst_5 {dimension_numbers = #tpu.dot_dimension_numbers<[1], [0], [0], [1], [0, 0, 1, 1], [], []>} : vector<8x128xbf16>, vector<128x128xbf16>, vector<8x128xf32> -> vector<8x128xf32>
    %21 = vector.extract_strided_slice %1 {offsets = [3, 0], sizes = [1, 128], strides = [1, 1]} : vector<8x128xf32> to vector<1x128xf32>
    %22 = vector.broadcast %21 : vector<1x128xf32> to vector<8x128xf32>
    %23 = arith.addf %20, %22 : vector<8x128xf32>
    %cst_6 = arith.constant 0.000000e+00 : f32
    %24 = vector.broadcast %cst_6 : f32 to vector<8x128xf32>
    %25 = arith.maximumf %23, %24 : vector<8x128xf32>
    %26 = arith.truncf %25 : vector<8x128xf32> to vector<8x128xbf16>
    %c0_7 = arith.constant 0 : index
    %c0_8 = arith.constant 0 : index
    %27 = vector.load %arg4[%c0_7, %c0_8] : memref<128x128xbf16, #tpu.memory_space<vmem>>, vector<128x128xbf16>
    %cst_9 = arith.constant dense<0.000000e+00> : vector<8x128xf32>
    %28 = tpu.matmul %26, %27, %cst_9 {dimension_numbers = #tpu.dot_dimension_numbers<[1], [0], [0], [1], [0, 0, 1, 1], [], []>} : vector<8x128xbf16>, vector<128x128xbf16>, vector<8x128xf32> -> vector<8x128xf32>
    %29 = vector.extract_strided_slice %1 {offsets = [4, 0], sizes = [1, 128], strides = [1, 1]} : vector<8x128xf32> to vector<1x128xf32>
    %30 = vector.broadcast %29 : vector<1x128xf32> to vector<8x128xf32>
    %31 = arith.addf %28, %30 : vector<8x128xf32>
    %cst_10 = arith.constant 0.000000e+00 : f32
    %32 = vector.broadcast %cst_10 : f32 to vector<8x128xf32>
    %33 = arith.maximumf %31, %32 : vector<8x128xf32>
    %34 = vector.extract_strided_slice %1 {offsets = [5, 0], sizes = [1, 128], strides = [1, 1]} : vector<8x128xf32> to vector<1x128xf32>
    %35 = vector.broadcast %34 : vector<1x128xf32> to vector<8x128xf32>
    %36 = arith.mulf %33, %35 : vector<8x128xf32>
    %cst_11 = arith.constant dense<0.000000e+00> : vector<8xf32>
    %37 = vector.multi_reduction <add>, %36, %cst_11 [1] : vector<8x128xf32> to vector<8xf32>
    %38 = vector.shape_cast %37 : vector<8xf32> to vector<8x1xf32>
    %39 = vector.extract_strided_slice %1 {offsets = [6, 0], sizes = [1, 128], strides = [1, 1]} : vector<8x128xf32> to vector<1x128xf32>
    %40 = vector.broadcast %38 : vector<8x1xf32> to vector<8x128xf32>
    %41 = vector.broadcast %39 : vector<1x128xf32> to vector<8x128xf32>
    %42 = arith.mulf %40, %41 : vector<8x128xf32>
    %43 = arith.addf %33, %42 : vector<8x128xf32>
    %44 = vector.extract_strided_slice %1 {offsets = [7, 0], sizes = [1, 128], strides = [1, 1]} : vector<8x128xf32> to vector<1x128xf32>
    %45 = vector.broadcast %44 : vector<1x128xf32> to vector<8x128xf32>
    %46 = arith.addf %43, %45 : vector<8x128xf32>
    %c0_12 = arith.constant 0 : index
    %c0_13 = arith.constant 0 : index
    %47 = vector.load %arg5[%c0_12, %c0_13] : memref<8x128xf32, #tpu.memory_space<vmem>>, vector<8x128xf32>
    tpu.vector_store %arg5[%c0_12, %c0_13], %46 {strides = array<i32>} : memref<8x128xf32, #tpu.memory_space<vmem>>, vector<8x128xf32>,
    return
  }
  func.func @transform_0(%arg0: i32) -> (i32, i32) {
    %c0_i32 = arith.constant 0 : i32
    %c0_i32_0 = arith.constant 0 : i32
    return %arg0, %c0_i32 : i32, i32
  }
  func.func @transform_1(%arg0: i32) -> (i32, i32) {
    %c0_i32 = arith.constant 0 : i32
    %c0_i32_0 = arith.constant 0 : i32
    %c0_i32_1 = arith.constant 0 : i32
    return %c0_i32, %c0_i32_0 : i32, i32
  }
  func.func @transform_2(%arg0: i32) -> (i32, i32) {
    %c0_i32 = arith.constant 0 : i32
    %c0_i32_0 = arith.constant 0 : i32
    %c0_i32_1 = arith.constant 0 : i32
    return %c0_i32, %c0_i32_0 : i32, i32
  }
  func.func @transform_3(%arg0: i32) -> (i32, i32) {
    %c0_i32 = arith.constant 0 : i32
    %c0_i32_0 = arith.constant 0 : i32
    %c0_i32_1 = arith.constant 0 : i32
    return %c0_i32, %c0_i32_0 : i32, i32
  }
  func.func @transform_4(%arg0: i32) -> (i32, i32) {
    %c0_i32 = arith.constant 0 : i32
    %c0_i32_0 = arith.constant 0 : i32
    return %arg0, %c0_i32 : i32, i32
  }
}

</mosaic_0001>

<llo_original>
// kernel: actor_critic_forward.1
$region0: #{actor_critic_forward.1}
  #allocation0 [shape = 'u32[]', space=smem, size = 0x4, offset = 0x4, fixed_abs, tag = 'smem constant byte address 0x4 - core index']
  #allocation1 [shape = 'u32[144,128]{1,0:T(1,128)}', space=vmem, size = 0x12000, scoped, tag = 'internal scratch']
  %s0 = inlined_call_operand.vmem [shape: f32[8,2], index: 0, kind: input, shape index: {}]
  %s1 = inlined_call_operand.vmem [shape: f32[8,128], index: 1, kind: input, shape index: {}]
  %s2 = inlined_call_operand.hbm [shape: bf16[128,128], index: 2, kind: input, shape index: {}]
  %s3 = inlined_call_operand.hbm [shape: bf16[128,128], index: 3, kind: input, shape index: {}]
  %s4 = inlined_call_operand.vmem [shape: f32[8,128], index: 4, kind: output, shape index: {}]
  %s5 = sld [smem:[#allocation0]]
  $region34: #{actor_critic_forward.1} parent=0
    _
  %s7 = ssub.s32 1, %s5
  %s8 = scalar_select 0, %s7, %s5
  $region1: #{actor_critic_forward.1} parent=0
    #allocation2 [shape = 'u8[32768]{0}', space=vmem, size = 0x8000, scoped, tag = 'input window, operand 2, single buffered']
    #allocation3 [shape = 's32[1]{0}', space=sflag, size = 0x4, scoped, tag = 'scoped memory for actor_critic_forward.1']
    #allocation4 [shape = 'u8[32768]{0}', space=vmem, size = 0x8000, scoped, tag = 'input window, operand 3, single buffered']
    #allocation5 [shape = 's32[1]{0}', space=sflag, size = 0x4, scoped, tag = 'scoped memory for actor_critic_forward.1']
    %9 = vsyncpa [#allocation3], 0
    %10 = vsyncpa [#allocation5], 0
    // Predicated region
    $region2: #{actor_critic_forward.1} parent=1 // pred_check
      _
    $region3: #{actor_critic_forward.1} parent=1 // pred_check_branch
      %12 = sbr.rel (0) target = $region5
    $region4: #{actor_critic_forward.1} parent=1 // pred_region
      _
    $region5: #{actor_critic_forward.1} parent=1 // pred_fallthru
      _
    // Predicated region
    $region6: #{actor_critic_forward.1} parent=1 // pred_check
      _
    $region7: #{actor_critic_forward.1} parent=1 // pred_check_branch
      %14 = sbr.rel (0) target = $region9
    $region8: #{actor_critic_forward.1} parent=1 // pred_region
      _
    $region9: #{actor_critic_forward.1} parent=1 // pred_fallthru
      _
    // Predicated region
    $region10: #{actor_critic_forward.1} parent=1 // pred_check
      _
    $region11: #{actor_critic_forward.1} parent=1 // pred_check_branch
      %16 = sbr.rel (0) target = $region13
    $region12: #{actor_critic_forward.1} parent=1 // pred_region
      %s18 = ssub.s32 1024, 1024
      %19 = vsyncadd [#allocation3], %s18
      %s20 = sshll.u32 [#allocation2], 4
      %s21 = int_to_ptr.vmem [resolvable:$true] %s20
      %26 = dma.hbm_to_vmem [thread:$0]  %s2, 1024, %s21, [#allocation3], 64, 64, 4
    $region13: #{actor_critic_forward.1} parent=1 // pred_fallthru
      _
    // Predicated region
    $region14: #{actor_critic_forward.1} parent=1 // pred_check
      _
    $region15: #{actor_critic_forward.1} parent=1 // pred_check_branch
      %28 = sbr.rel (0) target = $region17
    $region16: #{actor_critic_forward.1} parent=1 // pred_region
      %s30 = ssub.s32 1024, 1024
      %31 = vsyncadd [#allocation5], %s30
      %s32 = sshll.u32 [#allocation4], 4
      %s33 = int_to_ptr.vmem [resolvable:$true] %s32
      %38 = dma.hbm_to_vmem [thread:$0]  %s3, 1024, %s33, [#allocation5], 64, 64, 4
    $region17: #{actor_critic_forward.1} parent=1 // pred_fallthru
      _
    // Predicated region
    $region18: #{actor_critic_forward.1} parent=1 // pred_check
      _
    $region19: #{actor_critic_forward.1} parent=1 // pred_check_branch
      %40 = sbr.rel (0) target = $region21
    $region20: #{actor_critic_forward.1} parent=1 // pred_region
      %41 = dma.done [#allocation3], 1024
    $region21: #{actor_critic_forward.1} parent=1 // pred_fallthru
      _
    // Predicated region
    $region22: #{actor_critic_forward.1} parent=1 // pred_check
      _
    $region23: #{actor_critic_forward.1} parent=1 // pred_check_branch
      %43 = sbr.rel (0) target = $region25
    $region24: #{actor_critic_forward.1} parent=1 // pred_region
      %44 = dma.done [#allocation5], 1024
    $region25: #{actor_critic_forward.1} parent=1 // pred_fallthru
      _
    %v46 = vld [vmem:[%s0] sm:$0xff]
    %v47 = vld [vmem:[%s1] sm:$0xff]
    %49 = vset.pattern.permute.xlu0 0
    %50 = vperm.xlu0 %49, %v46
    %v51 = vpop.permute.xlu0 %50
    %v53 = vlaneseq
    %v54 = vshrl.u32 %v53, 7
    %v55 = vsub.s32 0, %v54
    %v56 = vrot.slane %v47, %v55
    %v57 = vmul.f32 %v51, %v56
    %58 = vset.pattern.permute.xlu0 1
    %59 = vperm.xlu0 %58, %v46
    %v60 = vpop.permute.xlu0 %59
    %v62 = vlaneseq
    %v63 = vshrl.u32 %v62, 7
    %v64 = vsub.s32 1, %v63
    %v65 = vrot.slane %v47, %v64
    %v66 = vmul.f32 %v60, %v65
    %v67 = vadd.f32 %v57, %v66
    %v68 = vlaneseq
    %v69 = vshrl.u32 %v68, 7
    %v70 = vsub.s32 2, %v69
    %v71 = vrot.slane %v47, %v70
    %v72 = vadd.f32 %v67, %v71
    %v73 = vmax.f32 %v72, 0.0
    %v74 = vpack.c.bf16 %v73, %v73
    %v75 = vld [vmem:[#allocation2] sm:$0xf]
    %v76 = vld [vmem:[#allocation2 + $0x4] sm:$0xf]
    %v77 = vld [vmem:[#allocation2 + $0x8] sm:$0xf]
    %v78 = vld [vmem:[#allocation2 + $0xc] sm:$0xf]
    %v79 = vld [vmem:[#allocation2 + $0x10] sm:$0xf]
    %v80 = vld [vmem:[#allocation2 + $0x14] sm:$0xf]
    %v81 = vld [vmem:[#allocation2 + $0x18] sm:$0xf]
    %v82 = vld [vmem:[#allocation2 + $0x1c] sm:$0xf]
    %v83 = vld [vmem:[#allocation2 + $0x20] sm:$0xf]
    %v84 = vld [vmem:[#allocation2 + $0x24] sm:$0xf]
    %v85 = vld [vmem:[#allocation2 + $0x28] sm:$0xf]
    %v86 = vld [vmem:[#allocation2 + $0x2c] sm:$0xf]
    %v87 = vld [vmem:[#allocation2 + $0x30] sm:$0xf]
    %v88 = vld [vmem:[#allocation2 + $0x34] sm:$0xf]
    %v89 = vld [vmem:[#allocation2 + $0x38] sm:$0xf]
    %v90 = vld [vmem:[#allocation2 + $0x3c] sm:$0xf]
    %v91 = vlaneseq
    %v92 = vshrl.u32 %v91, 7
    %v93 = vsub.s32 3, %v92
    %v94 = vrot.slane %v47, %v93
    %v111 = vunpack.c.l.b16 %v75
    %v112 = vunpack.c.l.b16 %v76
    %v113 = vunpack.c.l.b16 %v77
    %v114 = vunpack.c.l.b16 %v78
    %v115 = vunpack.c.l.b16 %v79
    %v116 = vunpack.c.l.b16 %v80
    %v117 = vunpack.c.l.b16 %v81
    %v118 = vunpack.c.l.b16 %v82
    %v119 = vunpack.c.l.b16 %v83
    %v120 = vunpack.c.l.b16 %v84
    %v121 = vunpack.c.l.b16 %v85
    %v122 = vunpack.c.l.b16 %v86
    %v123 = vunpack.c.l.b16 %v87
    %v124 = vunpack.c.l.b16 %v88
    %v125 = vunpack.c.l.b16 %v89
    %v126 = vunpack.c.l.b16 %v90
    %v127 = vpack.c.b16 %v112, %v111
    %v128 = vpack.c.b16 %v114, %v113
    %v129 = vpack.c.b16 %v116, %v115
    %v130 = vpack.c.b16 %v118, %v117
    %v131 = vpack.c.b16 %v120, %v119
    %v132 = vpack.c.b16 %v122, %v121
    %v133 = vpack.c.b16 %v124, %v123
    %v134 = vpack.c.b16 %v126, %v125
    %143 = vmatprep.subr.bf16.mxu0 0
    %144 = vmatpush1.bf16.msra.mxu0 %v134
    %145 = vmatprep.subr.bf16.mxu0 0
    %146 = vmatpush1.bf16.msra.mxu0 %v133
    %147 = vmatprep.subr.bf16.mxu0 0
    %148 = vmatpush1.bf16.msra.mxu0 %v132
    %149 = vmatprep.subr.bf16.mxu0 0
    %150 = vmatpush1.bf16.msra.mxu0 %v131
    %151 = vmatprep.subr.bf16.mxu0 0
    %152 = vmatpush1.bf16.msra.mxu0 %v130
    %153 = vmatprep.subr.bf16.mxu0 0
    %154 = vmatpush1.bf16.msra.mxu0 %v129
    %155 = vmatprep.subr.bf16.mxu0 0
    %156 = vmatpush1.bf16.msra.mxu0 %v128
    %157 = vmatprep.subr.bf16.mxu0 0
    %158 = vmatpush1.bf16.msra.mxu0 %v127
    %159 = vmatprep.subr.bf16.mxu0 0
    %160 = vmatpush2.bf16.msra.mxu0 0
    %161 = vmatprep.subr.bf16.mxu0 0
    %162 = vmatpush2.bf16.msra.mxu0 0
    %163 = vmatprep.subr.bf16.mxu0 0
    %164 = vmatpush2.bf16.msra.mxu0 0
    %165 = vmatprep.subr.bf16.mxu0 0
    %166 = vmatpush2.bf16.msra.mxu0 0
    %167 = vmatprep.subr.bf16.mxu0 0
    %168 = vmatpush2.bf16.msra.mxu0 0
    %169 = vmatprep.subr.bf16.mxu0 0
    %170 = vmatpush2.bf16.msra.mxu0 0
    %171 = vmatprep.subr.bf16.mxu0 0
    %172 = vmatpush2.bf16.msra.mxu0 0
    %173 = vmatprep.subr.bf16.mxu0 0
    %174 = vmatpush2.bf16.msra.mxu0 0
    %175 = vmatprep.mubr.bf16.mxu0 0
    %176 = vmatmul.mubr.bf16.gmra.mxu0 %v74
    %v177 = vpop.f32.mrf.mxu0
    %v178 = vadd.f32 %v94, %v177
    %v179 = vpop.f32.mrf.mxu0
    %v180 = vpop.f32.mrf.mxu0
    %v181 = vpop.f32.mrf.mxu0
    %182 = vdwg.mxu0
    %v183 = vmax.f32 %v178, 0.0
    %v184 = vpack.c.bf16 %v183, %v183
    %v185 = vld [vmem:[#allocation4] sm:$0xf]
    %v186 = vld [vmem:[#allocation4 + $0x4] sm:$0xf]
    %v187 = vld [vmem:[#allocation4 + $0x8] sm:$0xf]
    %v188 = vld [vmem:[#allocation4 + $0xc] sm:$0xf]
    %v189 = vld [vmem:[#allocation4 + $0x10] sm:$0xf]
    %v190 = vld [vmem:[#allocation4 + $0x14] sm:$0xf]
    %v191 = vld [vmem:[#allocation4 + $0x18] sm:$0xf]
    %v192 = vld [vmem:[#allocation4 + $0x1c] sm:$0xf]
    %v193 = vld [vmem:[#allocation4 + $0x20] sm:$0xf]
    %v194 = vld [vmem:[#allocation4 + $0x24] sm:$0xf]
    %v195 = vld [vmem:[#allocation4 + $0x28] sm:$0xf]
    %v196 = vld [vmem:[#allocation4 + $0x2c] sm:$0xf]
    %v197 = vld [vmem:[#allocation4 + $0x30] sm:$0xf]
    %v198 = vld [vmem:[#allocation4 + $0x34] sm:$0xf]
    %v199 = vld [vmem:[#allocation4 + $0x38] sm:$0xf]
    %v200 = vld [vmem:[#allocation4 + $0x3c] sm:$0xf]
    %v201 = vlaneseq
    %v202 = vshrl.u32 %v201, 7
    %v203 = vsub.s32 4, %v202
    %v204 = vrot.slane %v47, %v203
    %v221 = vunpack.c.l.b16 %v185
    %v222 = vunpack.c.l.b16 %v186
    %v223 = vunpack.c.l.b16 %v187
    %v224 = vunpack.c.l.b16 %v188
    %v225 = vunpack.c.l.b16 %v189
    %v226 = vunpack.c.l.b16 %v190
    %v227 = vunpack.c.l.b16 %v191
    %v228 = vunpack.c.l.b16 %v192
    %v229 = vunpack.c.l.b16 %v193
    %v230 = vunpack.c.l.b16 %v194
    %v231 = vunpack.c.l.b16 %v195
    %v232 = vunpack.c.l.b16 %v196
    %v233 = vunpack.c.l.b16 %v197
    %v234 = vunpack.c.l.b16 %v198
    %v235 = vunpack.c.l.b16 %v199
    %v236 = vunpack.c.l.b16 %v200
    %v237 = vpack.c.b16 %v222, %v221
    %v238 = vpack.c.b16 %v224, %v223
    %v239 = vpack.c.b16 %v226, %v225
    %v240 = vpack.c.b16 %v228, %v227
    %v241 = vpack.c.b16 %v230, %v229
    %v242 = vpack.c.b16 %v232, %v231
    %v243 = vpack.c.b16 %v234, %v233
    %v244 = vpack.c.b16 %v236, %v235
    %253 = vmatprep.subr.bf16.mxu0 0
    %254 = vmatpush1.bf16.msra.mxu0 %v244
    %255 = vmatprep.subr.bf16.mxu0 0
    %256 = vmatpush1.bf16.msra.mxu0 %v243
    %257 = vmatprep.subr.bf16.mxu0 0
    %258 = vmatpush1.bf16.msra.mxu0 %v242
    %259 = vmatprep.subr.bf16.mxu0 0
    %260 = vmatpush1.bf16.msra.mxu0 %v241
    %261 = vmatprep.subr.bf16.mxu0 0
    %262 = vmatpush1.bf16.msra.mxu0 %v240
    %263 = vmatprep.subr.bf16.mxu0 0
    %264 = vmatpush1.bf16.msra.mxu0 %v239
    %265 = vmatprep.subr.bf16.mxu0 0
    %266 = vmatpush1.bf16.msra.mxu0 %v238
    %267 = vmatprep.subr.bf16.mxu0 0
    %268 = vmatpush1.bf16.msra.mxu0 %v237
    %269 = vmatprep.subr.bf16.mxu0 0
    %270 = vmatpush2.bf16.msra.mxu0 0
    %271 = vmatprep.subr.bf16.mxu0 0
    %272 = vmatpush2.bf16.msra.mxu0 0
    %273 = vmatprep.subr.bf16.mxu0 0
    %274 = vmatpush2.bf16.msra.mxu0 0
    %275 = vmatprep.subr.bf16.mxu0 0
    %276 = vmatpush2.bf16.msra.mxu0 0
    %277 = vmatprep.subr.bf16.mxu0 0
    %278 = vmatpush2.bf16.msra.mxu0 0
    %279 = vmatprep.subr.bf16.mxu0 0
    %280 = vmatpush2.bf16.msra.mxu0 0
    %281 = vmatprep.subr.bf16.mxu0 0
    %282 = vmatpush2.bf16.msra.mxu0 0
    %283 = vmatprep.subr.bf16.mxu0 0
    %284 = vmatpush2.bf16.msra.mxu0 0
    %285 = vmatprep.mubr.bf16.mxu0 0
    %286 = vmatmul.mubr.bf16.gmra.mxu0 %v184
    %v287 = vpop.f32.mrf.mxu0
    %v288 = vadd.f32 %v204, %v287
    %v289 = vpop.f32.mrf.mxu0
    %v290 = vpop.f32.mrf.mxu0
    %v291 = vpop.f32.mrf.mxu0
    %292 = vdwg.mxu0
    %v293 = vmax.f32 %v288, 0.0
    %v294 = vlaneseq
    %v295 = vshrl.u32 %v294, 7
    %v296 = vsub.s32 5, %v295
    %v297 = vrot.slane %v47, %v296
    %v298 = vmul.f32 %v293, %v297
    %299 = vadd.xlane.f32.xlu0 %v298
    %v300 = vpop.xlane.xlu0 %299
    %v301 = vlaneseq
    %v302 = vshrl.u32 %v301, 7
    %v303 = vsub.s32 6, %v302
    %v304 = vrot.slane %v47, %v303
    %v305 = vmul.f32 %v300, %v304
    %v306 = vadd.f32 %v293, %v305
    %v307 = vlaneseq
    %v308 = vshrl.u32 %v307, 7
    %v309 = vsub.s32 7, %v308
    %v310 = vrot.slane %v47, %v309
    %v311 = vadd.f32 %v306, %v310
    %312 = vst [vmem:[%s4] sm:$0xff] %v311
    // Predicated region
    $region26: #{actor_critic_forward.1} parent=1 // pred_check
      _
    $region27: #{actor_critic_forward.1} parent=1 // pred_check_branch
      %314 = sbr.rel (0) target = $region29
    $region28: #{actor_critic_forward.1} parent=1 // pred_region
      _
    $region29: #{actor_critic_forward.1} parent=1 // pred_fallthru
      _
    // Predicated region
    $region30: #{actor_critic_forward.1} parent=1 // pred_check
      _
    $region31: #{actor_critic_forward.1} parent=1 // pred_check_branch
      %316 = sbr.rel (0) target = $region33
    $region32: #{actor_critic_forward.1} parent=1 // pred_region
      _
    $region33: #{actor_critic_forward.1} parent=1 // pred_fallthru
      _
    %317 = vsyncpa [#allocation3], 1
    %318 = vsyncpa [#allocation5], 1

</llo_original>
